<compile_context>
chip_gen: v7x
topology: tpu7x:2x2x1
jax: 0.10.0
libtpu: 0.0.40
codegen_flags: <defaults>
</compile_context>

<pallas_src>
import functools

import jax
import jax.numpy as jnp
from jax.experimental import pallas as pl
from jax.experimental.pallas import tpu as pltpu


def _round_up(n, m):
    return ((n + m - 1) // m) * m


def dropoutnet_kernel(x_ref, w1_ref, b1_ref, w2_ref, b2_ref, r1_ref, r2_ref, o_ref,
                      *, keep_threshold, inv_keep, apply_dropout):
    # ---- Linear(input_dim -> n_neurons): bf16 operands, f32 accumulation ----
    h = jnp.dot(x_ref[...], w1_ref[...], preferred_element_type=jnp.float32) + b1_ref[...]

    # ---- Dropout(p): integer-threshold keep mask (scale folded into w2) ----
    if apply_dropout:
        keep1 = r1_ref[...] >= jnp.int32(keep_threshold)
        h = jnp.where(keep1, h, 0.0)

    # ---- ReLU ----
    h = jnp.maximum(h, 0.0)

    # ---- Linear(n_neurons -> output_dim) ----
    f = jnp.dot(h.astype(jnp.bfloat16), w2_ref[...],
                preferred_element_type=jnp.float32) + b2_ref[...]

    # ---- Dropout(p): inverted dropout (same semantics as torch.nn.Dropout train mode) ----
    if apply_dropout:
        keep2 = r2_ref[...] >= jnp.int32(keep_threshold)
        f = jnp.where(keep2, f * jnp.float32(inv_keep), 0.0)

    o_ref[...] = f.astype(o_ref.dtype)


def dropoutnet_forward(x, params, seed, *, p_dropout=0.05, apply_dropout=True, tile_b=512):
    """Forward pass of DropOutNet. x: [B, input_dim] f32 -> [B, output_dim] f32."""
    w1, b1, w2, b2 = params          # w1:[in,n]  b1:[n]  w2:[n,out]  b2:[out]
    B, d_in = x.shape
    d_h, d_out = w1.shape[1], w2.shape[1]
    dropout_on = bool(apply_dropout) and float(p_dropout) > 0.0
    inv_keep = 1.0 / (1.0 - float(p_dropout)) if dropout_on else 1.0
    # keep iff r >= threshold, with r uniform in [0, 2^31)  ->  P(keep) = 1 - p
    keep_threshold = int(round(float(p_dropout) * (1 << 31)))

    # --- pad lane dims to multiples of 128, batch to a multiple of the tile ---
    din_p, dh_p, dout_p = (_round_up(d, 128) for d in (d_in, d_h, d_out))
    tb = min(int(tile_b), _round_up(B, 8))
    b_p = _round_up(B, tb)
    grid = (b_p // tb,)

    xp = jnp.zeros((b_p, din_p), jnp.bfloat16).at[:B, :d_in].set(x.astype(jnp.bfloat16))
    w1p = jnp.zeros((din_p, dh_p), jnp.bfloat16).at[:d_in, :d_h].set(w1.astype(jnp.bfloat16))
    b1p = jnp.zeros((1, dh_p), jnp.float32).at[0, :d_h].set(b1.astype(jnp.float32))
    w2_eff = w2 * jnp.float32(inv_keep) if dropout_on else w2   # fold first dropout's scale
    w2p = jnp.zeros((dh_p, dout_p), jnp.bfloat16).at[:d_h, :d_out].set(w2_eff.astype(jnp.bfloat16))
    b2p = jnp.zeros((1, dout_p), jnp.float32).at[0, :d_out].set(b2.astype(jnp.float32))

    # Dropout randomness: uniform int32 in [0, 2^31), one value per activation.
    k1, k2 = jax.random.split(jax.random.PRNGKey(int(seed)))
    r1 = (jax.random.bits(k1, (b_p, dh_p), dtype=jnp.uint32) >> 1).astype(jnp.int32)
    r2 = (jax.random.bits(k2, (b_p, dout_p), dtype=jnp.uint32) >> 1).astype(jnp.int32)

    kernel = functools.partial(
        dropoutnet_kernel,
        keep_threshold=keep_threshold,
        inv_keep=inv_keep,
        apply_dropout=dropout_on,
    )

    out_p = pl.pallas_call(
        kernel,
        out_shape=jax.ShapeDtypeStruct((b_p, dout_p), jnp.float32),
        grid=grid,
        in_specs=[
            pl.BlockSpec((tb, din_p), lambda i: (i, 0)),      # x tile (streamed)
            pl.BlockSpec((din_p, dh_p), lambda i: (0, 0)),    # w1 (resident)
            pl.BlockSpec((1, dh_p), lambda i: (0, 0)),        # b1 (resident)
            pl.BlockSpec((dh_p, dout_p), lambda i: (0, 0)),   # w2 (resident)
            pl.BlockSpec((1, dout_p), lambda i: (0, 0)),      # b2 (resident)
            pl.BlockSpec((tb, dh_p), lambda i: (i, 0)),       # dropout bits layer 1
            pl.BlockSpec((tb, dout_p), lambda i: (i, 0)),     # dropout bits layer 2
        ],
        out_specs=pl.BlockSpec((tb, dout_p), lambda i: (i, 0)),
        compiler_params=pltpu.CompilerParams(
            dimension_semantics=("parallel",),                # shard batch tiles on v7x's 2 TCs
            vmem_limit_bytes=32 * 1024 * 1024,                # safe on v5e/v6e/v7x for these tiles
        ),
    )(xp, w1p, b1p, w2p, b2p, r1, r2)

    return out_p[:B, :d_out]


def init_params(key, input_dim, n_neurons, output_dim):
    """torch.nn.Linear-style init: U(-1/sqrt(fan_in), 1/sqrt(fan_in)). Weights stored [in, out]."""
    k1, k2, k3, k4 = jax.random.split(key, 4)
    bound1 = 1.0 / jnp.sqrt(input_dim)
    bound2 = 1.0 / jnp.sqrt(n_neurons)
    w1 = jax.random.uniform(k1, (input_dim, n_neurons), jnp.float32, -bound1, bound1)
    b1 = jax.random.uniform(k2, (n_neurons,), jnp.float32, -bound1, bound1)
    w2 = jax.random.uniform(k3, (n_neurons, output_dim), jnp.float32, -bound2, bound2)
    b2 = jax.random.uniform(k4, (output_dim,), jnp.float32, -bound2, bound2)
    return w1, b1, w2, b2


if __name__ == "__main__":
    # Small shapes consistent with the module: x is [batch, input_dim].
    batch, input_dim, n_neurons, output_dim = 8, 16, 32, 8
    p_dropout = 0.05

    key = jax.random.PRNGKey(0)
    kx, kp = jax.random.split(key)
    x = jax.random.normal(kx, (batch, input_dim), dtype=jnp.float32)
    params = init_params(kp, input_dim, n_neurons, output_dim)
    w1, b1, w2, b2 = params

    # Eval mode (dropout off) vs. pure-JAX reference (bf16 matmul -> loose tolerance).
    out_eval = dropoutnet_forward(x, params, seed=0, p_dropout=p_dropout, apply_dropout=False)
    out_eval = jax.block_until_ready(out_eval)
    ref = jnp.maximum(x @ w1 + b1, 0.0) @ w2 + b2
    assert out_eval.shape == (batch, output_dim)
    assert float(jnp.max(jnp.abs(out_eval - ref))) < 5e-2

    # Train mode (dropout on), matching torch.nn.Dropout inverted-dropout semantics.
    out_train = dropoutnet_forward(x, params, seed=1234, p_dropout=p_dropout, apply_dropout=True)
    out_train = jax.block_until_ready(out_train)
    assert out_train.shape == (batch, output_dim)
    assert bool(jnp.all(jnp.isfinite(out_train)))

    # TODO(synk): inference_forward's 100-sample MC softmax averaging stays a host-side loop
    # over this kernel (not fused into the kernel itself).
    print("KERNEL_OK")
</pallas_src>

<mosaic_0001>
module attributes {stable_mosaic.version = 11 : i64} {
  func.func @dropoutnet_kernel(%arg0: i32, %arg1: memref<8x128xbf16, #tpu.memory_space<vmem>>, %arg2: memref<128x128xbf16, #tpu.memory_space<vmem>>, %arg3: memref<1x128xf32, #tpu.memory_space<vmem>>, %arg4: memref<128x128xbf16, #tpu.memory_space<vmem>>, %arg5: memref<1x128xf32, #tpu.memory_space<vmem>>, %arg6: memref<8x128xi32, #tpu.memory_space<vmem>>, %arg7: memref<8x128xi32, #tpu.memory_space<vmem>>, %arg8: memref<8x128xf32, #tpu.memory_space<vmem>>) attributes {dimension_semantics = [#tpu.dimension_semantics<parallel>], iteration_bounds = array<i64: 1>, scalar_prefetch = 0 : i64, scratch_operands = 0 : i64, tpu.core_type = #tpu.core_type<tc>, window_params = [{transform_indices = @transform_0, window_bounds = array<i64: 8, 128>}, {pipeline_mode = #tpu.pipeline_mode<synchronous>, transform_indices = @transform_1, window_bounds = array<i64: 128, 128>}, {pipeline_mode = #tpu.pipeline_mode<synchronous>, transform_indices = @transform_2, window_bounds = array<i64: 1, 128>}, {pipeline_mode = #tpu.pipeline_mode<synchronous>, transform_indices = @transform_3, window_bounds = array<i64: 128, 128>}, {pipeline_mode = #tpu.pipeline_mode<synchronous>, transform_indices = @transform_4, window_bounds = array<i64: 1, 128>}, {transform_indices = @transform_5, window_bounds = array<i64: 8, 128>}, {transform_indices = @transform_6, window_bounds = array<i64: 8, 128>}, {transform_indices = @transform_7, window_bounds = array<i64: 8, 128>}]} {
    %c0 = arith.constant 0 : index
    %c0_0 = arith.constant 0 : index
    %0 = vector.load %arg1[%c0, %c0_0] : memref<8x128xbf16, #tpu.memory_space<vmem>>, vector<8x128xbf16>
    %c0_1 = arith.constant 0 : index
    %c0_2 = arith.constant 0 : index
    %1 = vector.load %arg2[%c0_1, %c0_2] : memref<128x128xbf16, #tpu.memory_space<vmem>>, vector<128x128xbf16>
    %cst = arith.constant dense<0.000000e+00> : vector<8x128xf32>
    %2 = tpu.matmul %0, %1, %cst {dimension_numbers = #tpu.dot_dimension_numbers<[1], [0], [0], [1], [0, 0, 1, 1], [], []>} : vector<8x128xbf16>, vector<128x128xbf16>, vector<8x128xf32> -> vector<8x128xf32>
    %c0_3 = arith.constant 0 : index
    %c0_4 = arith.constant 0 : index
    %3 = vector.load %arg3[%c0_3, %c0_4] : memref<1x128xf32, #tpu.memory_space<vmem>>, vector<1x128xf32>
    %4 = vector.broadcast %3 : vector<1x128xf32> to vector<8x128xf32>
    %5 = arith.addf %2, %4 : vector<8x128xf32>
    %cst_5 = arith.constant 0.000000e+00 : f32
    %6 = vector.broadcast %cst_5 : f32 to vector<8x128xf32>
    %7 = arith.maximumf %5, %6 : vector<8x128xf32>
    %8 = arith.truncf %7 : vector<8x128xf32> to vector<8x128xbf16>
    %c0_6 = arith.constant 0 : index
    %c0_7 = arith.constant 0 : index
    %9 = vector.load %arg4[%c0_6, %c0_7] : memref<128x128xbf16, #tpu.memory_space<vmem>>, vector<128x128xbf16>
    %cst_8 = arith.constant dense<0.000000e+00> : vector<8x128xf32>
    %10 = tpu.matmul %8, %9, %cst_8 {dimension_numbers = #tpu.dot_dimension_numbers<[1], [0], [0], [1], [0, 0, 1, 1], [], []>} : vector<8x128xbf16>, vector<128x128xbf16>, vector<8x128xf32> -> vector<8x128xf32>
    %c0_9 = arith.constant 0 : index
    %c0_10 = arith.constant 0 : index
    %11 = vector.load %arg5[%c0_9, %c0_10] : memref<1x128xf32, #tpu.memory_space<vmem>>, vector<1x128xf32>
    %12 = vector.broadcast %11 : vector<1x128xf32> to vector<8x128xf32>
    %13 = arith.addf %10, %12 : vector<8x128xf32>
    %c0_11 = arith.constant 0 : index
    %c0_12 = arith.constant 0 : index
    %14 = vector.load %arg8[%c0_11, %c0_12] : memref<8x128xf32, #tpu.memory_space<vmem>>, vector<8x128xf32>
    tpu.vector_store %arg8[%c0_11, %c0_12], %13 {strides = array<i32>} : memref<8x128xf32, #tpu.memory_space<vmem>>, vector<8x128xf32>,
    return
  }
  func.func @transform_0(%arg0: i32) -> (i32, i32) {
    %c0_i32 = arith.constant 0 : i32
    %c0_i32_0 = arith.constant 0 : i32
    return %arg0, %c0_i32 : i32, i32
  }
  func.func @transform_1(%arg0: i32) -> (i32, i32) {
    %c0_i32 = arith.constant 0 : i32
    %c0_i32_0 = arith.constant 0 : i32
    %c0_i32_1 = arith.constant 0 : i32
    return %c0_i32, %c0_i32_0 : i32, i32
  }
  func.func @transform_2(%arg0: i32) -> (i32, i32) {
    %c0_i32 = arith.constant 0 : i32
    %c0_i32_0 = arith.constant 0 : i32
    %c0_i32_1 = arith.constant 0 : i32
    return %c0_i32, %c0_i32_0 : i32, i32
  }
  func.func @transform_3(%arg0: i32) -> (i32, i32) {
    %c0_i32 = arith.constant 0 : i32
    %c0_i32_0 = arith.constant 0 : i32
    %c0_i32_1 = arith.constant 0 : i32
    return %c0_i32, %c0_i32_0 : i32, i32
  }
  func.func @transform_4(%arg0: i32) -> (i32, i32) {
    %c0_i32 = arith.constant 0 : i32
    %c0_i32_0 = arith.constant 0 : i32
    %c0_i32_1 = arith.constant 0 : i32
    return %c0_i32, %c0_i32_0 : i32, i32
  }
  func.func @transform_5(%arg0: i32) -> (i32, i32) {
    %c0_i32 = arith.constant 0 : i32
    %c0_i32_0 = arith.constant 0 : i32
    return %arg0, %c0_i32 : i32, i32
  }
  func.func @transform_6(%arg0: i32) -> (i32, i32) {
    %c0_i32 = arith.constant 0 : i32
    %c0_i32_0 = arith.constant 0 : i32
    return %arg0, %c0_i32 : i32, i32
  }
  func.func @transform_7(%arg0: i32) -> (i32, i32) {
    %c0_i32 = arith.constant 0 : i32
    %c0_i32_0 = arith.constant 0 : i32
    return %arg0, %c0_i32 : i32, i32
  }
}

</mosaic_0001>

<llo_original>
// kernel: tpu_custom_call.1
$region0: #{tpu_custom_call.1}
  #allocation0 [shape = 'u32[]', space=smem, size = 0x4, offset = 0x4, fixed_abs, tag = 'smem constant byte address 0x4 - core index']
  #allocation1 [shape = 'u32[144,128]{1,0:T(1,128)}', space=vmem, size = 0x12000, scoped, tag = 'internal scratch']
  %s0 = inlined_call_operand.hbm [shape: bf16[8,128], index: 0, kind: input, shape index: {}]
  %s1 = inlined_call_operand.hbm [shape: bf16[128,128], index: 1, kind: input, shape index: {}]
  %s2 = inlined_call_operand.vmem [shape: f32[1,128], index: 2, kind: input, shape index: {}]
  %s3 = inlined_call_operand.hbm [shape: bf16[128,128], index: 3, kind: input, shape index: {}]
  %s4 = inlined_call_operand.vmem [shape: f32[1,128], index: 4, kind: input, shape index: {}]
  %s5 = inlined_call_operand.vmem [shape: s32[8,128], index: 5, kind: input, shape index: {}]
  %s6 = inlined_call_operand.vmem [shape: s32[8,128], index: 6, kind: input, shape index: {}]
  %s7 = inlined_call_operand.hbm [shape: f32[8,128], index: 7, kind: output, shape index: {}]
  %s8 = sld [smem:[#allocation0]]
  $region50: #{tpu_custom_call.1} parent=0
    _
  %s10 = ssub.s32 1, %s8
  %s11 = scalar_select 0, %s10, %s8
  $region1: #{tpu_custom_call.1} parent=0
    #allocation2 [shape = 'u8[2048]{0}', space=vmem, size = 0x800, scoped, tag = 'input window, operand 0, single buffered']
    #allocation3 [shape = 's32[1]{0}', space=sflag, size = 0x4, scoped, tag = 'scoped memory for tpu_custom_call.1']
    #allocation4 [shape = 's32[1]{0}', space=sflag, size = 0x4, scoped, tag = 'scoped memory for tpu_custom_call.1']
    #allocation5 [shape = 'u8[32768]{0}', space=vmem, size = 0x8000, scoped, tag = 'input window, operand 1, single buffered']
    #allocation6 [shape = 's32[1]{0}', space=sflag, size = 0x4, scoped, tag = 'scoped memory for tpu_custom_call.1']
    #allocation7 [shape = 'u8[32768]{0}', space=vmem, size = 0x8000, scoped, tag = 'input window, operand 3, single buffered']
    #allocation8 [shape = 'u8[4096]{0}', space=vmem, size = 0x1000, scoped, tag = 'output window, operand 0, single buffered']
    %12 = vsyncpa [#allocation3], 0
    %13 = vsyncpa [#allocation6], 0
    %14 = vsyncpa [#allocation4], 0
    // Predicated region
    $region2: #{tpu_custom_call.1} parent=1 // pred_check
      _
    $region3: #{tpu_custom_call.1} parent=1 // pred_check_branch
      %16 = sbr.rel (0) target = $region5
    $region4: #{tpu_custom_call.1} parent=1 // pred_region
      %s18 = ssub.s32 64, 64
      %19 = vsyncadd [#allocation3], %s18
      %s21 = sshll.u32 [#allocation2], 4
      %s22 = int_to_ptr.vmem [resolvable:$true] %s21
      %24 = dma.hbm_to_vmem [thread:$0]  %s0, 64, %s22, [#allocation3]
    $region5: #{tpu_custom_call.1} parent=1 // pred_fallthru
      _
    // Predicated region
    $region6: #{tpu_custom_call.1} parent=1 // pred_check
      _
    $region7: #{tpu_custom_call.1} parent=1 // pred_check_branch
      %26 = sbr.rel (0) target = $region9
    $region8: #{tpu_custom_call.1} parent=1 // pred_region
      %s28 = ssub.s32 1024, 1024
      %29 = vsyncadd [#allocation6], %s28
      %s30 = sshll.u32 [#allocation5], 4
      %s31 = int_to_ptr.vmem [resolvable:$true] %s30
      %36 = dma.hbm_to_vmem [thread:$0]  %s1, 1024, %s31, [#allocation6], 64, 64, 4
    $region9: #{tpu_custom_call.1} parent=1 // pred_fallthru
      _
    // Predicated region
    $region10: #{tpu_custom_call.1} parent=1 // pred_check
      _
    $region11: #{tpu_custom_call.1} parent=1 // pred_check_branch
      %38 = sbr.rel (0) target = $region13
    $region12: #{tpu_custom_call.1} parent=1 // pred_region
      _
    $region13: #{tpu_custom_call.1} parent=1 // pred_fallthru
      _
    // Predicated region
    $region14: #{tpu_custom_call.1} parent=1 // pred_check
      _
    $region15: #{tpu_custom_call.1} parent=1 // pred_check_branch
      %40 = sbr.rel (0) target = $region17
    $region16: #{tpu_custom_call.1} parent=1 // pred_region
      %s42 = ssub.s32 1024, 1024
      %43 = vsyncadd [#allocation6], %s42
      %s44 = sshll.u32 [#allocation7], 4
      %s45 = int_to_ptr.vmem [resolvable:$true] %s44
      %50 = dma.hbm_to_vmem [thread:$0]  %s3, 1024, %s45, [#allocation6], 64, 64, 4
    $region17: #{tpu_custom_call.1} parent=1 // pred_fallthru
      _
    // Predicated region
    $region18: #{tpu_custom_call.1} parent=1 // pred_check
      _
    $region19: #{tpu_custom_call.1} parent=1 // pred_check_branch
      %52 = sbr.rel (0) target = $region21
    $region20: #{tpu_custom_call.1} parent=1 // pred_region
      _
    $region21: #{tpu_custom_call.1} parent=1 // pred_fallthru
      _
    // Predicated region
    $region22: #{tpu_custom_call.1} parent=1 // pred_check
      _
    $region23: #{tpu_custom_call.1} parent=1 // pred_check_branch
      %54 = sbr.rel (0) target = $region25
    $region24: #{tpu_custom_call.1} parent=1 // pred_region
      _
    $region25: #{tpu_custom_call.1} parent=1 // pred_fallthru
      _
    // Predicated region
    $region26: #{tpu_custom_call.1} parent=1 // pred_check
      _
    $region27: #{tpu_custom_call.1} parent=1 // pred_check_branch
      %56 = sbr.rel (0) target = $region29
    $region28: #{tpu_custom_call.1} parent=1 // pred_region
      _
    $region29: #{tpu_custom_call.1} parent=1 // pred_fallthru
      _
    // Predicated region
    $region30: #{tpu_custom_call.1} parent=1 // pred_check
      _
    $region31: #{tpu_custom_call.1} parent=1 // pred_check_branch
      %58 = sbr.rel (0) target = $region33
    $region32: #{tpu_custom_call.1} parent=1 // pred_region
      %59 = dma.done [#allocation3], 64
    $region33: #{tpu_custom_call.1} parent=1 // pred_fallthru
      _
    // Predicated region
    $region34: #{tpu_custom_call.1} parent=1 // pred_check
      _
    $region35: #{tpu_custom_call.1} parent=1 // pred_check_branch
      %61 = sbr.rel (0) target = $region37
    $region36: #{tpu_custom_call.1} parent=1 // pred_region
      %62 = dma.done [#allocation6], 1024
    $region37: #{tpu_custom_call.1} parent=1 // pred_fallthru
      _
    // Predicated region
    $region38: #{tpu_custom_call.1} parent=1 // pred_check
      _
    $region39: #{tpu_custom_call.1} parent=1 // pred_check_branch
      %64 = sbr.rel (0) target = $region41
    $region40: #{tpu_custom_call.1} parent=1 // pred_region
      %65 = dma.done [#allocation6], 1024
    $region41: #{tpu_custom_call.1} parent=1 // pred_fallthru
      _
    %v67 = vld [vmem:[#allocation2] sm:$0xf]
    %v68 = vld [vmem:[#allocation5] sm:$0xf]
    %v69 = vld [vmem:[#allocation5 + $0x4] sm:$0xf]
    %v70 = vld [vmem:[#allocation5 + $0x8] sm:$0xf]
    %v71 = vld [vmem:[#allocation5 + $0xc] sm:$0xf]
    %v72 = vld [vmem:[#allocation5 + $0x10] sm:$0xf]
    %v73 = vld [vmem:[#allocation5 + $0x14] sm:$0xf]
    %v74 = vld [vmem:[#allocation5 + $0x18] sm:$0xf]
    %v75 = vld [vmem:[#allocation5 + $0x1c] sm:$0xf]
    %v76 = vld [vmem:[#allocation5 + $0x20] sm:$0xf]
    %v77 = vld [vmem:[#allocation5 + $0x24] sm:$0xf]
    %v78 = vld [vmem:[#allocation5 + $0x28] sm:$0xf]
    %v79 = vld [vmem:[#allocation5 + $0x2c] sm:$0xf]
    %v80 = vld [vmem:[#allocation5 + $0x30] sm:$0xf]
    %v81 = vld [vmem:[#allocation5 + $0x34] sm:$0xf]
    %v82 = vld [vmem:[#allocation5 + $0x38] sm:$0xf]
    %v83 = vld [vmem:[#allocation5 + $0x3c] sm:$0xf]
    %v84 = vld [vmem:[%s2] sm:$0x1]
    %v86 = vlaneseq
    %v87 = vshrl.u32 %v86, 7
    %v88 = vsub.s32 0, %v87
    %v89 = vrot.slane %v84, %v88
    %v107 = vunpack.c.l.b16 %v68
    %v108 = vunpack.c.l.b16 %v69
    %v109 = vunpack.c.l.b16 %v70
    %v110 = vunpack.c.l.b16 %v71
    %v111 = vunpack.c.l.b16 %v72
    %v112 = vunpack.c.l.b16 %v73
    %v113 = vunpack.c.l.b16 %v74
    %v114 = vunpack.c.l.b16 %v75
    %v115 = vunpack.c.l.b16 %v76
    %v116 = vunpack.c.l.b16 %v77
    %v117 = vunpack.c.l.b16 %v78
    %v118 = vunpack.c.l.b16 %v79
    %v119 = vunpack.c.l.b16 %v80
    %v120 = vunpack.c.l.b16 %v81
    %v121 = vunpack.c.l.b16 %v82
    %v122 = vunpack.c.l.b16 %v83
    %v123 = vpack.c.b16 %v108, %v107
    %v124 = vpack.c.b16 %v110, %v109
    %v125 = vpack.c.b16 %v112, %v111
    %v126 = vpack.c.b16 %v114, %v113
    %v127 = vpack.c.b16 %v116, %v115
    %v128 = vpack.c.b16 %v118, %v117
    %v129 = vpack.c.b16 %v120, %v119
    %v130 = vpack.c.b16 %v122, %v121
    %139 = vmatprep.subr.bf16.mxu0 0
    %140 = vmatpush1.bf16.msra.mxu0 %v123
    %141 = vmatprep.subr.bf16.mxu0 0
    %142 = vmatpush1.bf16.msra.mxu0 %v124
    %143 = vmatprep.subr.bf16.mxu0 0
    %144 = vmatpush1.bf16.msra.mxu0 %v125
    %145 = vmatprep.subr.bf16.mxu0 0
    %146 = vmatpush1.bf16.msra.mxu0 %v126
    %147 = vmatprep.subr.bf16.mxu0 0
    %148 = vmatpush1.bf16.msra.mxu0 %v127
    %149 = vmatprep.subr.bf16.mxu0 0
    %150 = vmatpush1.bf16.msra.mxu0 %v128
    %151 = vmatprep.subr.bf16.mxu0 0
    %152 = vmatpush1.bf16.msra.mxu0 %v129
    %153 = vmatprep.subr.bf16.mxu0 0
    %154 = vmatpush1.bf16.msra.mxu0 %v130
    %155 = vmatprep.subr.bf16.mxu0 0
    %156 = vmatpush1.bf16.msra.mxu0 0
    %157 = vmatprep.subr.bf16.mxu0 0
    %158 = vmatpush1.bf16.msra.mxu0 0
    %159 = vmatprep.subr.bf16.mxu0 0
    %160 = vmatpush1.bf16.msra.mxu0 0
    %161 = vmatprep.subr.bf16.mxu0 0
    %162 = vmatpush1.bf16.msra.mxu0 0
    %163 = vmatprep.subr.bf16.mxu0 0
    %164 = vmatpush1.bf16.msra.mxu0 0
    %165 = vmatprep.subr.bf16.mxu0 0
    %166 = vmatpush1.bf16.msra.mxu0 0
    %167 = vmatprep.subr.bf16.mxu0 0
    %168 = vmatpush1.bf16.msra.mxu0 0
    %169 = vmatprep.subr.bf16.mxu0 0
    %170 = vmatpush1.bf16.msra.mxu0 0
    %171 = vmatprep.mubr.bf16.mxu0 0
    %172 = vmatmul.mubr.bf16.gmra.mrb[0].mxu0 %v67
    %v173 = vpop.f32.mrb[0].mxu0
    %v174 = vadd.f32 %v89, %v173
    %v175 = vpop.f32.mrb[0].mxu0
    %v176 = vpop.f32.mrb[0].mxu0
    %v177 = vpop.f32.mrb[0].mxu0
    %178 = vdwg.mxu0
    %v179 = vmax.f32 %v174, 0.0
    %v180 = vpack.c.bf16 %v179, %v179
    %v181 = vld [vmem:[#allocation7] sm:$0xf]
    %v182 = vld [vmem:[#allocation7 + $0x4] sm:$0xf]
    %v183 = vld [vmem:[#allocation7 + $0x8] sm:$0xf]
    %v184 = vld [vmem:[#allocation7 + $0xc] sm:$0xf]
    %v185 = vld [vmem:[#allocation7 + $0x10] sm:$0xf]
    %v186 = vld [vmem:[#allocation7 + $0x14] sm:$0xf]
    %v187 = vld [vmem:[#allocation7 + $0x18] sm:$0xf]
    %v188 = vld [vmem:[#allocation7 + $0x1c] sm:$0xf]
    %v189 = vld [vmem:[#allocation7 + $0x20] sm:$0xf]
    %v190 = vld [vmem:[#allocation7 + $0x24] sm:$0xf]
    %v191 = vld [vmem:[#allocation7 + $0x28] sm:$0xf]
    %v192 = vld [vmem:[#allocation7 + $0x2c] sm:$0xf]
    %v193 = vld [vmem:[#allocation7 + $0x30] sm:$0xf]
    %v194 = vld [vmem:[#allocation7 + $0x34] sm:$0xf]
    %v195 = vld [vmem:[#allocation7 + $0x38] sm:$0xf]
    %v196 = vld [vmem:[#allocation7 + $0x3c] sm:$0xf]
    %v197 = vld [vmem:[%s4] sm:$0x1]
    %v199 = vlaneseq
    %v200 = vshrl.u32 %v199, 7
    %v201 = vsub.s32 0, %v200
    %v202 = vrot.slane %v197, %v201
    %v220 = vunpack.c.l.b16 %v181
    %v221 = vunpack.c.l.b16 %v182
    %v222 = vunpack.c.l.b16 %v183
    %v223 = vunpack.c.l.b16 %v184
    %v224 = vunpack.c.l.b16 %v185
    %v225 = vunpack.c.l.b16 %v186
    %v226 = vunpack.c.l.b16 %v187
    %v227 = vunpack.c.l.b16 %v188
    %v228 = vunpack.c.l.b16 %v189
    %v229 = vunpack.c.l.b16 %v190
    %v230 = vunpack.c.l.b16 %v191
    %v231 = vunpack.c.l.b16 %v192
    %v232 = vunpack.c.l.b16 %v193
    %v233 = vunpack.c.l.b16 %v194
    %v234 = vunpack.c.l.b16 %v195
    %v235 = vunpack.c.l.b16 %v196
    %v236 = vpack.c.b16 %v221, %v220
    %v237 = vpack.c.b16 %v223, %v222
    %v238 = vpack.c.b16 %v225, %v224
    %v239 = vpack.c.b16 %v227, %v226
    %v240 = vpack.c.b16 %v229, %v228
    %v241 = vpack.c.b16 %v231, %v230
    %v242 = vpack.c.b16 %v233, %v232
    %v243 = vpack.c.b16 %v235, %v234
    %252 = vmatprep.subr.bf16.mxu0 0
    %253 = vmatpush1.bf16.msra.mxu0 %v236
    %254 = vmatprep.subr.bf16.mxu0 0
    %255 = vmatpush1.bf16.msra.mxu0 %v237
    %256 = vmatprep.subr.bf16.mxu0 0
    %257 = vmatpush1.bf16.msra.mxu0 %v238
    %258 = vmatprep.subr.bf16.mxu0 0
    %259 = vmatpush1.bf16.msra.mxu0 %v239
    %260 = vmatprep.subr.bf16.mxu0 0
    %261 = vmatpush1.bf16.msra.mxu0 %v240
    %262 = vmatprep.subr.bf16.mxu0 0
    %263 = vmatpush1.bf16.msra.mxu0 %v241
    %264 = vmatprep.subr.bf16.mxu0 0
    %265 = vmatpush1.bf16.msra.mxu0 %v242
    %266 = vmatprep.subr.bf16.mxu0 0
    %267 = vmatpush1.bf16.msra.mxu0 %v243
    %268 = vmatprep.subr.bf16.mxu0 0
    %269 = vmatpush1.bf16.msra.mxu0 0
    %270 = vmatprep.subr.bf16.mxu0 0
    %271 = vmatpush1.bf16.msra.mxu0 0
    %272 = vmatprep.subr.bf16.mxu0 0
    %273 = vmatpush1.bf16.msra.mxu0 0
    %274 = vmatprep.subr.bf16.mxu0 0
    %275 = vmatpush1.bf16.msra.mxu0 0
    %276 = vmatprep.subr.bf16.mxu0 0
    %277 = vmatpush1.bf16.msra.mxu0 0
    %278 = vmatprep.subr.bf16.mxu0 0
    %279 = vmatpush1.bf16.msra.mxu0 0
    %280 = vmatprep.subr.bf16.mxu0 0
    %281 = vmatpush1.bf16.msra.mxu0 0
    %282 = vmatprep.subr.bf16.mxu0 0
    %283 = vmatpush1.bf16.msra.mxu0 0
    %284 = vmatprep.mubr.bf16.mxu0 0
    %285 = vmatmul.mubr.bf16.gmra.mrb[0].mxu0 %v180
    %v286 = vpop.f32.mrb[0].mxu0
    %v287 = vadd.f32 %v202, %v286
    %v288 = vpop.f32.mrb[0].mxu0
    %v289 = vpop.f32.mrb[0].mxu0
    %v290 = vpop.f32.mrb[0].mxu0
    %291 = vdwg.mxu0
    %292 = vst [vmem:[#allocation8] sm:$0xff] %v287
    // Predicated region
    $region42: #{tpu_custom_call.1} parent=1 // pred_check
      _
    $region43: #{tpu_custom_call.1} parent=1 // pred_check_branch
      %294 = sbr.rel (0) target = $region45
    $region44: #{tpu_custom_call.1} parent=1 // pred_region
      %s296 = ssub.s32 128, 128
      %297 = vsyncadd [#allocation4], %s296
      %s299 = sshll.u32 [#allocation8], 4
      %s300 = int_to_ptr.vmem [resolvable:$true] %s299
      %302 = dma.vmem_to_hbm [thread:$0]  %s300, 128, %s7, [#allocation4]
    $region45: #{tpu_custom_call.1} parent=1 // pred_fallthru
      _
    // Predicated region
    $region46: #{tpu_custom_call.1} parent=1 // pred_check
      _
    $region47: #{tpu_custom_call.1} parent=1 // pred_check_branch
      %304 = sbr.rel (0) target = $region49
    $region48: #{tpu_custom_call.1} parent=1 // pred_region
      %305 = dma.done [#allocation4], 128
    $region49: #{tpu_custom_call.1} parent=1 // pred_fallthru
      _
    %306 = vsyncpa [#allocation3], 1
    %307 = vsyncpa [#allocation6], 1
    %308 = vsyncpa [#allocation4], 1

</llo_original>
